<compile_context>
chip_gen: v5e
topology: v5e:2x2
jax: 0.10.0
libtpu: 0.0.40
codegen_flags: <defaults>
</compile_context>

<pallas_src>
import functools

import jax
import jax.numpy as jnp
from jax import lax
from jax.experimental import pallas as pl
from jax.experimental.pallas import tpu as pltpu


def block_unit_kernel(x_ref, wA_ref, bA_ref, wB_ref, bB_ref, out_ref, *,
                      c_out: int, bps: int):
    # x_ref:  (bps, c_in, L)
    # wA_ref: (2*c_out, 3*c_in)  rows [0:c_out)   = conv1 im2col (tap-major: l-1|l|l+1)
    #                            rows [c_out:...) = residual 1x1 conv (center-tap block)
    # bA_ref: (2*c_out, 1)       [b1 ; b_res]
    # wB_ref: (c_out, 3*c_out)   conv2 im2col
    # bB_ref: (c_out, 1)
    # out_ref: (bps, c_out, L)
    L = x_ref.shape[2]

    # Conv boundary masks: cheap compares against constants (no modulo).
    col = lax.broadcasted_iota(jnp.int32, (1, L), 1)
    not_start = col != 0          # left tap x[l-1] invalid at l == 0   (zero pad)
    not_end = col != (L - 1)      # right tap x[l+1] invalid at l == L-1 (zero pad)

    wA = wA_ref[...]
    wB = wB_ref[...]
    # Hoist the bias broadcasts out of the per-batch loop (no CSE in-loop).
    bA = jnp.broadcast_to(bA_ref[...], (wA_ref.shape[0], L))
    bB = jnp.broadcast_to(bB_ref[...], (wB_ref.shape[0], L))

    def im2col(v):
        # v: (C, L) -> (3*C, L), rows grouped tap-major: [x[l-1] | x[l] | x[l+1]]
        left = jnp.where(not_start, pltpu.roll(v, shift=1, axis=1), 0.0)
        right = jnp.where(not_end, pltpu.roll(v, shift=L - 1, axis=1), 0.0)
        return jnp.concatenate([left, v, right], axis=0)

    # Static unrolled loop over the (small) batch fold of this grid step: each
    # iteration is two plain 2-D MXU matmuls, all lane-aligned, no relayouts.
    for b in range(bps):
        x = x_ref[b].astype(jnp.float32)                                    # (c_in, L)

        # ---- stage A: conv_block1 + fused 1x1 residual, one MXU matmul ----
        ha = jnp.dot(wA, im2col(x), preferred_element_type=jnp.float32) + bA
        h1 = jnp.maximum(ha[:c_out], 0.0)            # relu(conv1(x))
        res = ha[c_out:]                             # residual path (1x1 conv / identity)

        # ---- stage B: conv_block2, one MXU matmul ----
        h2 = jnp.dot(wB, im2col(h1), preferred_element_type=jnp.float32) + bB

        # dropout: identity (eval mode)
        out_ref[b] = (h2 + res).astype(out_ref.dtype)


def pack_params(params, *, c_in, c_out):
    """Pre-pack weights (layout plumbing, zero kernel cost).

    wA: (2*c_out, 3*c_in)  rows 0..c_out-1 = conv1 im2col (tap-major),
                           rows c_out..    = residual 1x1 conv in the center-tap block
                                             (identity matrix when c_in == c_out).
    bA: (2*c_out, 1)       [b1 ; b_res]
    wB: (c_out, 3*c_out)   conv2 im2col.      bB: (c_out, 1) = b2.
    K dims stay at 3*C (multiples of 8) -> sublane-aligned im2col operands.
    """
    w1, b1, w2, b2, w3, b3 = params

    w1f = jnp.transpose(w1, (0, 2, 1)).reshape(c_out, 3 * c_in)    # [o, k*c_in + i]
    w2f = jnp.transpose(w2, (0, 2, 1)).reshape(c_out, 3 * c_out)

    if c_in != c_out:
        w3m = w3[:, :, 0]                                          # (c_out, c_in)
        b3v = b3
    else:
        # identity residual expressed through the same fused matmul (exact in f32)
        w3m = jnp.eye(c_out, dtype=jnp.float32)
        b3v = jnp.zeros((c_out, 1), jnp.float32)
    zblk = jnp.zeros((c_out, c_in), jnp.float32)
    w3f = jnp.concatenate([zblk, w3m, zblk], axis=1)               # center tap only

    wA = jnp.concatenate([w1f, w3f], axis=0)                       # (2*c_out, 3*c_in)
    bA = jnp.concatenate([b1, b3v], axis=0)                        # (2*c_out, 1)
    return wA, bA, w2f, b2


def _default_batch_per_step(B, L, target_lanes=512, min_steps=2):
    """Fold enough batch elements per grid step to amortize per-step overhead
    (aim for >= target_lanes lanes of work) while keeping >= min_steps steps so
    both v7x TensorCores get work and the pipeliner can double-buffer."""
    divisors = [d for d in range(1, B + 1) if B % d == 0]
    ok = [d for d in divisors if B // d >= min_steps] or [1]
    for d in ok:
        if d * L >= target_lanes:
            return d
    return ok[-1]


def block_unit_forward(x, params, *, c_in, c_out, batch_per_step=None):
    """x: (B, c_in, L) float32 -> (B, c_out, L) float32.

    No wrapper-side reshapes/transposes: x and the output stay in their native
    (B, C, L) layout; the grid tiles the batch axis directly.
    """
    B, cin, L = x.shape
    assert cin == c_in
    if batch_per_step is None:
        batch_per_step = _default_batch_per_step(B, L)
    assert B % batch_per_step == 0
    bps = batch_per_step
    G = B // bps

    wA, bA, wB, bB = pack_params(params, c_in=c_in, c_out=c_out)

    kernel = functools.partial(block_unit_kernel, c_out=c_out, bps=bps)

    return pl.pallas_call(
        kernel,
        out_shape=jax.ShapeDtypeStruct((B, c_out, L), jnp.float32),
        grid_spec=pltpu.PrefetchScalarGridSpec(
            num_scalar_prefetch=0,
            grid=(G,),
            in_specs=[
                pl.BlockSpec((bps, c_in, L), lambda g: (g, 0, 0)),
                pl.BlockSpec(wA.shape, lambda g: (0, 0)),
                pl.BlockSpec(bA.shape, lambda g: (0, 0)),
                pl.BlockSpec(wB.shape, lambda g: (0, 0)),
                pl.BlockSpec(bB.shape, lambda g: (0, 0)),
            ],
            out_specs=pl.BlockSpec((bps, c_out, L), lambda g: (g, 0, 0)),
        ),
        compiler_params=pltpu.CompilerParams(
            dimension_semantics=("parallel",)),
    )(x, wA, bA, wB, bB)


def reference_forward(x, params, *, c_in, c_out):
    """Pure-JAX reference (lax conv) for verification."""
    w1, b1, w2, b2, w3, b3 = params
    dn = ("NCH", "OIH", "NCH")

    def conv(inp, w, b, pad):
        y = lax.conv_general_dilated(inp, w, window_strides=(1,),
                                     padding=[(pad, pad)],
                                     dimension_numbers=dn)
        return y + b[None, :, :]   # b is (C_out, 1) -> broadcasts over (B, C, L)

    h1 = jnp.maximum(conv(x, w1, b1, 1), 0.0)
    h2 = conv(h1, w2, b2, 1)
    res = conv(x, w3, b3, 0) if c_in != c_out else x
    return h2 + res


def init_params(key, c_in, c_out, std=0.01):
    ks = jax.random.split(key, 6)
    w1 = std * jax.random.normal(ks[0], (c_out, c_in, 3), jnp.float32)
    b1 = std * jax.random.normal(ks[1], (c_out, 1), jnp.float32)
    w2 = std * jax.random.normal(ks[2], (c_out, c_out, 3), jnp.float32)
    b2 = std * jax.random.normal(ks[3], (c_out, 1), jnp.float32)
    w3 = std * jax.random.normal(ks[4], (c_out, c_in, 1), jnp.float32)
    b3 = std * jax.random.normal(ks[5], (c_out, 1), jnp.float32)
    return (w1, b1, w2, b2, w3, b3)


if __name__ == "__main__":
    B, C_IN, C_OUT, L = 2, 8, 16, 128

    key = jax.random.PRNGKey(0)
    kx, kp = jax.random.split(key)
    x = jax.random.normal(kx, (B, C_IN, L), jnp.float32)
    params = init_params(kp, C_IN, C_OUT)

    y_ref = reference_forward(x, params, c_in=C_IN, c_out=C_OUT)

    # Default: grid=(2,) "parallel" (one batch element per step; both v7x cores busy).
    y = block_unit_forward(x, params, c_in=C_IN, c_out=C_OUT)
    y = jax.block_until_ready(y)
    assert y.shape == (B, C_OUT, L)
    assert jnp.allclose(y, y_ref, atol=1e-5, rtol=1e-5), "mismatch vs reference"

    # Also exercise the batch-folded path (bps=2 -> one step, unrolled in-kernel loop).
    y2 = block_unit_forward(x, params, c_in=C_IN, c_out=C_OUT, batch_per_step=2)
    y2 = jax.block_until_ready(y2)
    assert jnp.allclose(y2, y_ref, atol=1e-5, rtol=1e-5), "mismatch vs reference (bps=2)"

    print("KERNEL_OK")
</pallas_src>

<mosaic_0001>
module attributes {stable_mosaic.version = 11 : i64} {
  func.func @block_unit_kernel(%arg0: i32, %arg1: memref<1x8x128xf32, #tpu.memory_space<vmem>>, %arg2: memref<32x24xf32, #tpu.memory_space<vmem>>, %arg3: memref<32x1xf32, #tpu.memory_space<vmem>>, %arg4: memref<16x48xf32, #tpu.memory_space<vmem>>, %arg5: memref<16x1xf32, #tpu.memory_space<vmem>>, %arg6: memref<1x16x128xf32, #tpu.memory_space<vmem>>) attributes {dimension_semantics = [#tpu.dimension_semantics<parallel>], iteration_bounds = array<i64: 2>, scalar_prefetch = 0 : i64, scratch_operands = 0 : i64, tpu.core_type = #tpu.core_type<tc>, window_params = [{transform_indices = @transform_0, window_bounds = array<i64: 1, 8, 128>}, {pipeline_mode = #tpu.pipeline_mode<synchronous>, transform_indices = @transform_1, window_bounds = array<i64: 32, 24>}, {pipeline_mode = #tpu.pipeline_mode<synchronous>, transform_indices = @transform_2, window_bounds = array<i64: 32, 1>}, {pipeline_mode = #tpu.pipeline_mode<synchronous>, transform_indices = @transform_3, window_bounds = array<i64: 16, 48>}, {pipeline_mode = #tpu.pipeline_mode<synchronous>, transform_indices = @transform_4, window_bounds = array<i64: 16, 1>}, {transform_indices = @transform_5, window_bounds = array<i64: 1, 16, 128>}]} {
    %0 = tpu.iota {dimensions = array<i32: 1>} : vector<1x128xi32>
    %c0_i32 = arith.constant 0 : i32
    %1 = vector.broadcast %c0_i32 : i32 to vector<1x128xi32>
    %2 = arith.cmpi ne, %0, %1 : vector<1x128xi32>
    %c127_i32 = arith.constant 127 : i32
    %3 = vector.broadcast %c127_i32 : i32 to vector<1x128xi32>
    %4 = arith.cmpi ne, %0, %3 : vector<1x128xi32>
    %c0 = arith.constant 0 : index
    %c0_0 = arith.constant 0 : index
    %5 = vector.load %arg2[%c0, %c0_0] : memref<32x24xf32, #tpu.memory_space<vmem>>, vector<32x24xf32>
    %c0_1 = arith.constant 0 : index
    %c0_2 = arith.constant 0 : index
    %6 = vector.load %arg4[%c0_1, %c0_2] : memref<16x48xf32, #tpu.memory_space<vmem>>, vector<16x48xf32>
    %c0_3 = arith.constant 0 : index
    %c0_4 = arith.constant 0 : index
    %7 = vector.load %arg3[%c0_3, %c0_4] : memref<32x1xf32, #tpu.memory_space<vmem>>, vector<32x1xf32>
    %8 = vector.shape_cast %7 : vector<32x1xf32> to vector<32x1xf32>
    %9 = vector.broadcast %8 : vector<32x1xf32> to vector<32x128xf32>
    %c0_5 = arith.constant 0 : index
    %c0_6 = arith.constant 0 : index
    %10 = vector.load %arg5[%c0_5, %c0_6] : memref<16x1xf32, #tpu.memory_space<vmem>>, vector<16x1xf32>
    %11 = vector.shape_cast %10 : vector<16x1xf32> to vector<16x1xf32>
    %12 = vector.broadcast %11 : vector<16x1xf32> to vector<16x128xf32>
    %c0_7 = arith.constant 0 : index
    %c0_8 = arith.constant 0 : index
    %c0_9 = arith.constant 0 : index
    %13 = vector.load %arg1[%c0_7, %c0_8, %c0_9] : memref<1x8x128xf32, #tpu.memory_space<vmem>>, vector<1x8x128xf32>
    %14 = vector.shape_cast %13 : vector<1x8x128xf32> to vector<8x128xf32>
    %c1_i32 = arith.constant 1 : i32
    %15 = tpu.dynamic_rotate %14 by %c1_i32 dim 1 : vector<8x128xf32>, i32 -> vector<8x128xf32>
    %cst = arith.constant 0.000000e+00 : f32
    %16 = vector.shape_cast %2 : vector<1x128xi1> to vector<1x128xi1>
    %17 = vector.broadcast %16 : vector<1x128xi1> to vector<8x128xi1>
    %18 = vector.broadcast %cst : f32 to vector<8x128xf32>
    %19 = arith.select %17, %15, %18 : vector<8x128xi1>, vector<8x128xf32>
    %c127_i32_10 = arith.constant 127 : i32
    %20 = tpu.dynamic_rotate %14 by %c127_i32_10 dim 1 : vector<8x128xf32>, i32 -> vector<8x128xf32>
    %cst_11 = arith.constant 0.000000e+00 : f32
    %21 = vector.shape_cast %4 : vector<1x128xi1> to vector<1x128xi1>
    %22 = vector.broadcast %21 : vector<1x128xi1> to vector<8x128xi1>
    %23 = vector.broadcast %cst_11 : f32 to vector<8x128xf32>
    %24 = arith.select %22, %20, %23 : vector<8x128xi1>, vector<8x128xf32>
    %25 = tpu.concatenate %19, %14, %24 in 0 : vector<8x128xf32>, vector<8x128xf32>, vector<8x128xf32> -> vector<24x128xf32>
    %cst_12 = arith.constant dense<0.000000e+00> : vector<32x128xf32>
    %26 = tpu.matmul %5, %25, %cst_12 {dimension_numbers = #tpu.dot_dimension_numbers<[1], [0], [0], [1], [0, 0, 1, 1], [], []>} : vector<32x24xf32>, vector<24x128xf32>, vector<32x128xf32> -> vector<32x128xf32>
    %27 = arith.addf %26, %9 : vector<32x128xf32>
    %28 = vector.extract_strided_slice %27 {offsets = [0, 0], sizes = [16, 128], strides = [1, 1]} : vector<32x128xf32> to vector<16x128xf32>
    %cst_13 = arith.constant 0.000000e+00 : f32
    %29 = vector.broadcast %cst_13 : f32 to vector<16x128xf32>
    %30 = arith.maximumf %28, %29 : vector<16x128xf32>
    %31 = vector.extract_strided_slice %27 {offsets = [16, 0], sizes = [16, 128], strides = [1, 1]} : vector<32x128xf32> to vector<16x128xf32>
    %c1_i32_14 = arith.constant 1 : i32
    %32 = tpu.dynamic_rotate %30 by %c1_i32_14 dim 1 : vector<16x128xf32>, i32 -> vector<16x128xf32>
    %cst_15 = arith.constant 0.000000e+00 : f32
    %33 = vector.shape_cast %2 : vector<1x128xi1> to vector<1x128xi1>
    %34 = vector.broadcast %33 : vector<1x128xi1> to vector<16x128xi1>
    %35 = vector.broadcast %cst_15 : f32 to vector<16x128xf32>
    %36 = arith.select %34, %32, %35 : vector<16x128xi1>, vector<16x128xf32>
    %c127_i32_16 = arith.constant 127 : i32
    %37 = tpu.dynamic_rotate %30 by %c127_i32_16 dim 1 : vector<16x128xf32>, i32 -> vector<16x128xf32>
    %cst_17 = arith.constant 0.000000e+00 : f32
    %38 = vector.shape_cast %4 : vector<1x128xi1> to vector<1x128xi1>
    %39 = vector.broadcast %38 : vector<1x128xi1> to vector<16x128xi1>
    %40 = vector.broadcast %cst_17 : f32 to vector<16x128xf32>
    %41 = arith.select %39, %37, %40 : vector<16x128xi1>, vector<16x128xf32>
    %42 = tpu.concatenate %36, %30, %41 in 0 : vector<16x128xf32>, vector<16x128xf32>, vector<16x128xf32> -> vector<48x128xf32>
    %cst_18 = arith.constant dense<0.000000e+00> : vector<16x128xf32>
    %43 = tpu.matmul %6, %42, %cst_18 {dimension_numbers = #tpu.dot_dimension_numbers<[1], [0], [0], [1], [0, 0, 1, 1], [], []>} : vector<16x48xf32>, vector<48x128xf32>, vector<16x128xf32> -> vector<16x128xf32>
    %44 = arith.addf %43, %12 : vector<16x128xf32>
    %45 = arith.addf %44, %31 : vector<16x128xf32>
    %c0_19 = arith.constant 0 : index
    %c0_20 = arith.constant 0 : index
    %c0_21 = arith.constant 0 : index
    %46 = vector.load %arg6[%c0_19, %c0_20, %c0_21] : memref<1x16x128xf32, #tpu.memory_space<vmem>>, vector<1x16x128xf32>
    %47 = vector.shape_cast %46 : vector<1x16x128xf32> to vector<16x128xf32>
    %48 = vector.shape_cast %45 : vector<16x128xf32> to vector<1x16x128xf32>
    tpu.vector_store %arg6[%c0_19, %c0_20, %c0_21], %48 {strides = array<i32>} : memref<1x16x128xf32, #tpu.memory_space<vmem>>, vector<1x16x128xf32>,
    return
  }
  func.func @transform_0(%arg0: i32) -> (i32, i32, i32) {
    %c0_i32 = arith.constant 0 : i32
    %c0_i32_0 = arith.constant 0 : i32
    %c0_i32_1 = arith.constant 0 : i32
    return %arg0, %c0_i32, %c0_i32_0 : i32, i32, i32
  }
  func.func @transform_1(%arg0: i32) -> (i32, i32) {
    %c0_i32 = arith.constant 0 : i32
    %c0_i32_0 = arith.constant 0 : i32
    %c0_i32_1 = arith.constant 0 : i32
    return %c0_i32, %c0_i32_0 : i32, i32
  }
  func.func @transform_2(%arg0: i32) -> (i32, i32) {
    %c0_i32 = arith.constant 0 : i32
    %c0_i32_0 = arith.constant 0 : i32
    %c0_i32_1 = arith.constant 0 : i32
    return %c0_i32, %c0_i32_0 : i32, i32
  }
  func.func @transform_3(%arg0: i32) -> (i32, i32) {
    %c0_i32 = arith.constant 0 : i32
    %c0_i32_0 = arith.constant 0 : i32
    %c0_i32_1 = arith.constant 0 : i32
    return %c0_i32, %c0_i32_0 : i32, i32
  }
  func.func @transform_4(%arg0: i32) -> (i32, i32) {
    %c0_i32 = arith.constant 0 : i32
    %c0_i32_0 = arith.constant 0 : i32
    %c0_i32_1 = arith.constant 0 : i32
    return %c0_i32, %c0_i32_0 : i32, i32
  }
  func.func @transform_5(%arg0: i32) -> (i32, i32, i32) {
    %c0_i32 = arith.constant 0 : i32
    %c0_i32_0 = arith.constant 0 : i32
    %c0_i32_1 = arith.constant 0 : i32
    return %arg0, %c0_i32, %c0_i32_0 : i32, i32, i32
  }
}

</mosaic_0001>

<llo_original>
// kernel: tpu_custom_call.1
$region0: #{tpu_custom_call.1}
  #allocation0 [shape = 'u32[]', space=smem, size = 0x4, offset = 0x4, fixed_abs, tag = 'smem constant byte address 0x4 - core index']
  #allocation1 [shape = 'u32[72,128]{1,0:T(1,128)}', space=vmem, size = 0x9000, scoped, tag = 'internal scratch']
  %s0 = inlined_call_operand.vmem [shape: f32[2,8,128], index: 0, kind: input, shape index: {}]
  %s1 = inlined_call_operand.vmem [shape: f32[32,24], index: 1, kind: input, shape index: {}]
  %s2 = inlined_call_operand.vmem [shape: f32[32,1], index: 2, kind: input, shape index: {}]
  %s3 = inlined_call_operand.vmem [shape: f32[16,48], index: 3, kind: input, shape index: {}]
  %s4 = inlined_call_operand.vmem [shape: f32[16,1], index: 4, kind: input, shape index: {}]
  %s5 = inlined_call_operand.hbm [shape: f32[2,16,128], index: 5, kind: output, shape index: {}]
  %s6 = sld [smem:[#allocation0]]
  $region53: #{tpu_custom_call.1} parent=0
    _
  %s8 = ssub.s32 1, %s6
  %s9 = scalar_select 0, %s8, %s6
  $region1: #{tpu_custom_call.1} parent=0
    #allocation2 [shape = 'u8[16384]{0}', space=vmem, size = 0x4000, scoped, tag = 'output window, operand 0']
    #allocation3 [shape = 's32[2]{0}', space=sflag, size = 0x8, scoped, tag = 'scoped memory for tpu_custom_call.1']
    %10 = vsyncpa [#allocation3], 0
    %s11 = scalar_lea.sflag [#allocation3], 1
    %12 = vsyncpa %s11, 0
    loop: start=0, step=1, limit=4
    $region2: #{tpu_custom_call.1} parent=1 // loop_pre_header
      _
    $region3: #{tpu_custom_call.1} parent=1 // loop_header
      %s14 = sphi 0, %s18
      %p15 = scmp.ge.s32.totalorder %s14, 4
      %s24 = sphi 0, %s26
      %s27 = sphi 0, %s24
      %s28 = sphi 0, %s27
      %s44 = sphi 0, %s28
      %s48 = sphi 0, %s48
      %s50 = sphi 0, %s48
      %s51 = sphi 0, %s50
      %s65 = sphi 0, %s51
      %s69 = sphi 0, %s69
      %s71 = sphi 0, %s69
      %s72 = sphi 0, %s71
      %s86 = sphi 0, %s72
      %s90 = sphi 0, %s90
      %s92 = sphi 0, %s90
      %s93 = sphi 0, %s92
      %s107 = sphi 0, %s93
      %s111 = sphi 0, %s111
      %s113 = sphi 0, %s111
      %s114 = sphi 0, %s113
      %s128 = sphi 0, %s114
      %s134 = sphi 0, %s136
      %s137 = sphi 0, %s134
      %s138 = sphi 0, %s137
      %s154 = sphi 0, %s138
    $region4: #{tpu_custom_call.1} parent=1 // loop_header_branch
      %17 = sbr.rel (%p15) target = $region8
    $region5: #{tpu_custom_call.1} parent=1 // loop_body
      %s19 = ssub.s32 %s14, 1
      %s20 = ssub.s32 %s14, 2
      %s21 = sadd.s32 %s14, 1
      %s22 = ssub.s32 %s14, %s21
      %p23 = scmp.eq.s32.totalorder %s22, 0
      %s25 = sadd.s32 %s24, 1
      %s26 = scalar_select %p23, %s24, %s25
      %p29 = pneg %p23
      %p30 = scmp.eq.s32.totalorder %s14, 1
      %p31 = por %p29, %p30
      %p32 = scmp.ne.s32.totalorder %s24, %s27
      %p33 = scmp.eq.s32.totalorder %s14, 0
      %p34 = por %p32, %p33
      %p35 = scmp.ne.s32.totalorder %s24, %s27
      %p36 = scmp.eq.s32.totalorder %s19, 1
      %p37 = por %p35, %p36
      %p38 = scmp.ne.s32.totalorder %s27, %s28
      %p39 = scmp.eq.s32.totalorder %s19, 0
      %p40 = por %p38, %p39
      %p41 = scmp.ne.s32.totalorder %s27, %s28
      %p42 = scmp.eq.s32.totalorder %s20, 1
      %p43 = por %p41, %p42
      %p45 = scmp.ne.s32.totalorder %s28, %s44
      %p46 = scmp.eq.s32.totalorder %s20, 0
      %p47 = por %p45, %p46
      %s49 = sadd.s32 %s48, 1
      %p52 = scmp.eq.s32.totalorder %s14, 1
      %p53 = scmp.ne.s32.totalorder %s48, %s50
      %p54 = scmp.eq.s32.totalorder %s14, 0
      %p55 = por %p53, %p54
      %p56 = scmp.ne.s32.totalorder %s48, %s50
      %p57 = scmp.eq.s32.totalorder %s19, 1
      %p58 = por %p56, %p57
      %p59 = scmp.ne.s32.totalorder %s50, %s51
      %p60 = scmp.eq.s32.totalorder %s19, 0
      %p61 = por %p59, %p60
      %p62 = scmp.ne.s32.totalorder %s50, %s51
      %p63 = scmp.eq.s32.totalorder %s20, 1
      %p64 = por %p62, %p63
      %p66 = scmp.ne.s32.totalorder %s51, %s65
      %p67 = scmp.eq.s32.totalorder %s20, 0
      %p68 = por %p66, %p67
      %s70 = sadd.s32 %s69, 1
      %p73 = scmp.eq.s32.totalorder %s14, 1
      %p74 = scmp.ne.s32.totalorder %s69, %s71
      %p75 = scmp.eq.s32.totalorder %s14, 0
      %p76 = por %p74, %p75
      %p77 = scmp.ne.s32.totalorder %s69, %s71
      %p78 = scmp.eq.s32.totalorder %s19, 1
      %p79 = por %p77, %p78
      %p80 = scmp.ne.s32.totalorder %s71, %s72
      %p81 = scmp.eq.s32.totalorder %s19, 0
      %p82 = por %p80, %p81
      %p83 = scmp.ne.s32.totalorder %s71, %s72
      %p84 = scmp.eq.s32.totalorder %s20, 1
      %p85 = por %p83, %p84
      %p87 = scmp.ne.s32.totalorder %s72, %s86
      %p88 = scmp.eq.s32.totalorder %s20, 0
      %p89 = por %p87, %p88
      %s91 = sadd.s32 %s90, 1
      %p94 = scmp.eq.s32.totalorder %s14, 1
      %p95 = scmp.ne.s32.totalorder %s90, %s92
      %p96 = scmp.eq.s32.totalorder %s14, 0
      %p97 = por %p95, %p96
      %p98 = scmp.ne.s32.totalorder %s90, %s92
      %p99 = scmp.eq.s32.totalorder %s19, 1
      %p100 = por %p98, %p99
      %p101 = scmp.ne.s32.totalorder %s92, %s93
      %p102 = scmp.eq.s32.totalorder %s19, 0
      %p103 = por %p101, %p102
      %p104 = scmp.ne.s32.totalorder %s92, %s93
      %p105 = scmp.eq.s32.totalorder %s20, 1
      %p106 = por %p104, %p105
      %p108 = scmp.ne.s32.totalorder %s93, %s107
      %p109 = scmp.eq.s32.totalorder %s20, 0
      %p110 = por %p108, %p109
      %s112 = sadd.s32 %s111, 1
      %p115 = scmp.eq.s32.totalorder %s14, 1
      %p116 = scmp.ne.s32.totalorder %s111, %s113
      %p117 = scmp.eq.s32.totalorder %s14, 0
      %p118 = por %p116, %p117
      %p119 = scmp.ne.s32.totalorder %s111, %s113
      %p120 = scmp.eq.s32.totalorder %s19, 1
      %p121 = por %p119, %p120
      %p122 = scmp.ne.s32.totalorder %s113, %s114
      %p123 = scmp.eq.s32.totalorder %s19, 0
      %p124 = por %p122, %p123
      %p125 = scmp.ne.s32.totalorder %s113, %s114
      %p126 = scmp.eq.s32.totalorder %s20, 1
      %p127 = por %p125, %p126
      %p129 = scmp.ne.s32.totalorder %s114, %s128
      %p130 = scmp.eq.s32.totalorder %s20, 0
      %p131 = por %p129, %p130
      %s132 = ssub.s32 %s14, %s21
      %p133 = scmp.eq.s32.totalorder %s132, 0
      %s135 = sadd.s32 %s134, 1
      %s136 = scalar_select %p133, %s134, %s135
      %p139 = pneg %p133
      %p140 = scmp.eq.s32.totalorder %s14, 1
      %p141 = por %p139, %p140
      %p142 = scmp.ne.s32.totalorder %s134, %s137
      %p143 = scmp.eq.s32.totalorder %s14, 0
      %p144 = por %p142, %p143
      %p145 = scmp.ne.s32.totalorder %s134, %s137
      %p146 = scmp.eq.s32.totalorder %s19, 1
      %p147 = por %p145, %p146
      %p148 = scmp.ne.s32.totalorder %s137, %s138
      %p149 = scmp.eq.s32.totalorder %s19, 0
      %p150 = por %p148, %p149
      %p151 = scmp.ne.s32.totalorder %s137, %s138
      %p152 = scmp.eq.s32.totalorder %s20, 1
      %p153 = por %p151, %p152
      %p155 = scmp.ne.s32.totalorder %s138, %s154
      %p156 = scmp.eq.s32.totalorder %s20, 0
      %p157 = por %p155, %p156
      %p158 = scmp.le.s32.totalorder 1, %s14
      %p159 = scmp.lt.s32.totalorder %s14, 3
      %p160 = pnand %p158, %p159
      %p161 = pneg %p160
      // Predicated region
      $region9: #{tpu_custom_call.1} parent=5 // pred_check
        _
      $region10: #{tpu_custom_call.1} parent=5 // pred_check_branch
        %163 = sbr.rel (%p160) target = $region12
      $region11: #{tpu_custom_call.1} parent=5 // pred_region
        %s164 = ssub.s32 %s14, 1
        // Predicated region
        $region13: #{tpu_custom_call.1} parent=11 // pred_check
          %p165 = pneg %p61
        $region14: #{tpu_custom_call.1} parent=11 // pred_check_branch
          %167 = sbr.rel (%p165) target = $region16
        $region15: #{tpu_custom_call.1} parent=11 // pred_region
          _
        $region16: #{tpu_custom_call.1} parent=11 // pred_fallthru
          _
        // Predicated region
        $region17: #{tpu_custom_call.1} parent=11 // pred_check
          %p168 = pneg %p82
        $region18: #{tpu_custom_call.1} parent=11 // pred_check_branch
          %170 = sbr.rel (%p168) target = $region20
        $region19: #{tpu_custom_call.1} parent=11 // pred_region
          _
        $region20: #{tpu_custom_call.1} parent=11 // pred_fallthru
          _
        // Predicated region
        $region21: #{tpu_custom_call.1} parent=11 // pred_check
          %p171 = pneg %p103
        $region22: #{tpu_custom_call.1} parent=11 // pred_check_branch
          %173 = sbr.rel (%p171) target = $region24
        $region23: #{tpu_custom_call.1} parent=11 // pred_region
          _
        $region24: #{tpu_custom_call.1} parent=11 // pred_fallthru
          _
        // Predicated region
        $region25: #{tpu_custom_call.1} parent=11 // pred_check
          %p174 = pneg %p124
        $region26: #{tpu_custom_call.1} parent=11 // pred_check_branch
          %176 = sbr.rel (%p174) target = $region28
        $region27: #{tpu_custom_call.1} parent=11 // pred_region
          _
        $region28: #{tpu_custom_call.1} parent=11 // pred_fallthru
          _
      $region12: #{tpu_custom_call.1} parent=5 // pred_fallthru
        _
      %p177 = scmp.lt.s32.totalorder %s14, 2
      // Predicated region
      $region29: #{tpu_custom_call.1} parent=5 // pred_check
        %p178 = pneg %p177
      $region30: #{tpu_custom_call.1} parent=5 // pred_check_branch
        %180 = sbr.rel (%p178) target = $region32
      $region31: #{tpu_custom_call.1} parent=5 // pred_region
        // Predicated region
        $region33: #{tpu_custom_call.1} parent=31 // pred_check
          %p181 = pneg %p34
        $region34: #{tpu_custom_call.1} parent=31 // pred_check_branch
          %183 = sbr.rel (%p181) target = $region36
        $region35: #{tpu_custom_call.1} parent=31 // pred_region
          %p184 = scmp.lt.s32.totalorder %s14, 1
          %s185 = scalar_select %p184, %s14, 1
          %s186 = smul.addr %s185, 8
          %s187 = scalar_lea.vmem %s0, %s186
        $region36: #{tpu_custom_call.1} parent=31 // pred_fallthru
          _
      $region32: #{tpu_custom_call.1} parent=5 // pred_fallthru
        _
      %p188 = scmp.le.s32.totalorder 1, %s14
      %p189 = scmp.lt.s32.totalorder %s14, 3
      %p190 = pnand %p188, %p189
      %p191 = pneg %p190
      // Predicated region
      $region37: #{tpu_custom_call.1} parent=5 // pred_check
        _
      $region38: #{tpu_custom_call.1} parent=5 // pred_check_branch
        %193 = sbr.rel (%p190) target = $region40
      $region39: #{tpu_custom_call.1} parent=5 // pred_region
        %s194 = ssub.s32 %s14, 1
        %p195 = scmp.lt.s32.totalorder %s19, 1
        %s196 = scalar_select %p195, %s19, 1
        %s197 = smul.addr %s196, 8
        %s198 = scalar_lea.vmem %s0, %s197
        %p199 = pneg %p40
        %p200 = pneg %p37
        %p201 = pneg %p61
        %p202 = pneg %p58
        %p203 = pneg %p82
        %p204 = pneg %p79
        %p205 = pneg %p103
        %p206 = pneg %p100
        %p207 = pneg %p124
        %p208 = pneg %p121
        %p209 = pneg %p150
        %p210 = pneg %p147
        %s211 = sand.u32 %s137, 1
        %s212 = scalar_lea.sflag [#allocation3], %s211
        %s213 = sand.u32 %s137, 1
        %s214 = smul.addr %s213, 16
        %s215 = scalar_lea.vmem [#allocation2], %s214
        %p216 = scmp.lt.s32.totalorder %s19, 1
        %s217 = scalar_select %p216, %s19, 1
        %s218 = smul.addr %s217, 8
        %s219 = scalar_lea.vmem %s0, %s218
        %v220 = vlaneseq
        %v221 = vand.u32 %v220, 127
        %vm222 = vcmp.ne.s32.totalorder %v221, 0
        %vm223 = vcmp.ne.s32.totalorder %v221, 127
        %v224 = vld [vmem:[%s1] sm:$0xff]
        %v225 = vld [vmem:[%s1 + $0x8] sm:$0xff]
        %v226 = vld [vmem:[%s1 + $0x10] sm:$0xff]
        %v227 = vld [vmem:[%s1 + $0x18] sm:$0xff]
        %v228 = vld [vmem:[%s3] sm:$0xff]
        %v229 = vld [vmem:[%s3 + $0x8] sm:$0xff]
        %v230 = vld [vmem:[%s2] sm:$0xff]
        %v231 = vld [vmem:[%s2 + $0x8] sm:$0xff]
        %v232 = vld [vmem:[%s2 + $0x10] sm:$0xff]
        %v233 = vld [vmem:[%s2 + $0x18] sm:$0xff]
        %235 = vset.pattern.permute.xlu0 0
        %236 = vperm.xlu0 %235, %v230
        %v237 = vpop.permute.xlu0 %236
        %240 = vset.pattern.permute.xlu0 0
        %241 = vperm.xlu0 %240, %v231
        %v242 = vpop.permute.xlu0 %241
        %245 = vset.pattern.permute.xlu0 0
        %246 = vperm.xlu0 %245, %v232
        %v247 = vpop.permute.xlu0 %246
        %250 = vset.pattern.permute.xlu0 0
        %251 = vperm.xlu0 %250, %v233
        %v252 = vpop.permute.xlu0 %251
        %v254 = vld [vmem:[%s4] sm:$0xff]
        %v255 = vld [vmem:[%s4 + $0x8] sm:$0xff]
        %257 = vset.pattern.permute.xlu0 0
        %258 = vperm.xlu0 %257, %v254
        %v259 = vpop.permute.xlu0 %258
        %262 = vset.pattern.permute.xlu0 0
        %263 = vperm.xlu0 %262, %v255
        %v264 = vpop.permute.xlu0 %263
        %v266 = vld [vmem:[%s219] sm:$0xff]
        %267 = vrot.lane.b32.xlu0 %v266, 1
        %v268 = vpop.permute.xlu0 %267
        %v269 = vsel %vm222, 1, 0
        %vm270 = vcmp.eq.s32.totalorder %v269, 1
        %v271 = vsel %vm270, %v268, 0.0
        %272 = vrot.lane.b32.xlu0 %v266, 127
        %v273 = vpop.permute.xlu0 %272
        %v274 = vsel %vm223, 1, 0
        %vm275 = vcmp.eq.s32.totalorder %v274, 1
        %v276 = vsel %vm275, %v273, 0.0
        %vm277 = vcmask 195584
        %v279 = vsel %vm277, %v224, 0
        %v282 = vsel %vm277, %v225, 0
        %v285 = vsel %vm277, %v226, 0
        %v288 = vsel %vm277, %v227, 0
        %290 = vmatpush.msra.mxu0 0.0
        %291 = vmatpush.msra.mxu0 0.0
        %292 = vmatpush.msra.mxu0 0.0
        %293 = vmatpush.msra.mxu0 0.0
        %294 = vmatpush.msra.mxu0 0.0
        %295 = vmatpush.msra.mxu0 0.0
        %296 = vmatpush.msra.mxu0 0.0
        %297 = vmatpush.msra.mxu0 0.0
        %298 = vmatpush.msra.mxu0 0.0
        %299 = vmatpush.msra.mxu0 0.0
        %300 = vmatpush.msra.mxu0 0.0
        %301 = vmatpush.msra.mxu0 0.0
        %302 = vmatpush.msra.mxu0 0.0
        %303 = vmatpush.msra.mxu0 %v276
        %304 = vmatpush.msra.mxu0 %v266
        %305 = vmatpush.msra.mxu0 %v271
        %306 = vmatmul.f32.gmra.mxu0 %v279
        %v307 = vpop.f32.mrf.mxu0
        %v308 = vadd.f32 %v237, %v307
        %309 = vmatmul.f32.gmra.mxu0 %v282
        %v310 = vpop.f32.mrf.mxu0
        %v311 = vadd.f32 %v242, %v310
        %312 = vmatmul.f32.gmra.mxu0 %v285
        %v313 = vpop.f32.mrf.mxu0
        %v314 = vadd.f32 %v247, %v313
        %315 = vmatmul.f32.gmra.mxu0 %v288
        %v316 = vpop.f32.mrf.mxu0
        %v317 = vadd.f32 %v252, %v316
        %318 = vdwg.mxu0
        %v319 = vmax.f32 %v308, 0.0
        %v320 = vmax.f32 %v311, 0.0
        %321 = vrot.lane.b32.xlu0 %v319, 1
        %v322 = vpop.permute.xlu0 %321
        %323 = vrot.lane.b32.xlu0 %v320, 1
        %v324 = vpop.permute.xlu0 %323
        %v325 = vsel %vm270, %v322, 0.0
        %v326 = vsel %vm270, %v324, 0.0
        %327 = vrot.lane.b32.xlu0 %v319, 127
        %v328 = vpop.permute.xlu0 %327
        %329 = vrot.lane.b32.xlu0 %v320, 127
        %v330 = vpop.permute.xlu0 %329
        %v331 = vsel %vm275, %v328, 0.0
        %v332 = vsel %vm275, %v330, 0.0
        %vm333 = vcmask 392192
        %v335 = vsel %vm333, %v228, 0
        %v338 = vsel %vm333, %v229, 0
        %340 = vmatpush.msra.mxu0 0.0
        %341 = vmatpush.msra.mxu0 0.0
        %342 = vmatpush.msra.mxu0 0.0
        %343 = vmatpush.msra.mxu0 0.0
        %344 = vmatpush.msra.mxu0 0.0
        %345 = vmatpush.msra.mxu0 0.0
        %346 = vmatpush.msra.mxu0 0.0
        %347 = vmatpush.msra.mxu0 0.0
        %348 = vmatpush.msra.mxu0 0.0
        %349 = vmatpush.msra.mxu0 0.0
        %350 = vmatpush.msra.mxu0 %v332
        %351 = vmatpush.msra.mxu0 %v331
        %352 = vmatpush.msra.mxu0 %v320
        %353 = vmatpush.msra.mxu0 %v319
        %354 = vmatpush.msra.mxu0 %v326
        %355 = vmatpush.msra.mxu0 %v325
        %356 = vmatmul.f32.gmra.mxu0 %v335
        %v357 = vpop.f32.mrf.mxu0
        %v358 = vadd.f32 %v259, %v357
        %359 = vmatmul.f32.gmra.mxu0 %v338
        %v360 = vpop.f32.mrf.mxu0
        %v361 = vadd.f32 %v264, %v360
        %362 = vdwg.mxu0
        %v363 = vadd.f32 %v358, %v314
        %v364 = vadd.f32 %v361, %v317
        %365 = vst [vmem:[%s215] sm:$0xff] %v363
        %366 = vst [vmem:[%s215 + $0x8] sm:$0xff] %v364
        %s367 = sand.u32 %s137, 1
        %s368 = scalar_lea.sflag [#allocation3], %s367
        %s369 = sand.u32 %s137, 1
        %s370 = smul.addr %s369, 16
        %s371 = scalar_lea.vmem [#allocation2], %s370
        // Predicated region
        $region41: #{tpu_custom_call.1} parent=39 // pred_check
          %p372 = pneg %p147
        $region42: #{tpu_custom_call.1} parent=39 // pred_check_branch
          %374 = sbr.rel (%p372) target = $region44
        $region43: #{tpu_custom_call.1} parent=39 // pred_region
          %376 = vsyncadd %s368, 0
          %s377 = smul.addr %s19, 2
          %s378 = smul.addr %s377, 8
          %s379 = scalar_lea.hbm %s5, %s378
          %s380 = sshll.u32 %s371, 4
          %s381 = int_to_ptr.vmem [resolvable:$true] %s380
          %s382 = sshll.u32 %s379, 4
          %s383 = int_to_ptr.hbm [resolvable:$true] %s382
          %388 = dma.vmem_to_hbm [thread:$0]  %s381, 256, %s383, %s368, 128, 128, 8
        $region44: #{tpu_custom_call.1} parent=39 // pred_fallthru
          _
      $region40: #{tpu_custom_call.1} parent=5 // pred_fallthru
        _
      %p389 = scmp.le.s32.totalorder 2, %s14
      // Predicated region
      $region45: #{tpu_custom_call.1} parent=5 // pred_check
        %p390 = pneg %p389
      $region46: #{tpu_custom_call.1} parent=5 // pred_check_branch
        %392 = sbr.rel (%p390) target = $region48
      $region47: #{tpu_custom_call.1} parent=5 // pred_region
        %s393 = ssub.s32 %s14, 2
        // Predicated region
        $region49: #{tpu_custom_call.1} parent=47 // pred_check
          %p394 = pneg %p153
        $region50: #{tpu_custom_call.1} parent=47 // pred_check_branch
          %396 = sbr.rel (%p394) target = $region52
        $region51: #{tpu_custom_call.1} parent=47 // pred_region
          %s397 = sand.u32 %s138, 1
          %s398 = scalar_lea.sflag [#allocation3], %s397
          %s399 = sand.u32 %s138, 1
          %s400 = smul.addr %s399, 16
          %s401 = scalar_lea.vmem [#allocation2], %s400
          %403 = dma.done %s398, 256
        $region52: #{tpu_custom_call.1} parent=47 // pred_fallthru
          _
      $region48: #{tpu_custom_call.1} parent=5 // pred_fallthru
        _
    $region6: #{tpu_custom_call.1} parent=1 // loop_footer
      %s18 = sadd.s32 1, %s14
    $region7: #{tpu_custom_call.1} parent=1 // loop_footer_branch
      %13 = sbr.rel target = $region3
    $region8: #{tpu_custom_call.1} parent=1 // loop_exit
      _
    %404 = vsyncpa [#allocation3], 1
    %s405 = scalar_lea.sflag [#allocation3], 1
    %406 = vsyncpa %s405, 1

</llo_original>
